<compile_context>
chip_gen: v6e
topology: v6e:2x2x1
jax: 0.10.0
libtpu: 0.0.40
codegen_flags: <defaults>
</compile_context>

<pallas_src>
import jax
import jax.numpy as jnp
from jax import lax
from jax.experimental import pallas as pl
from jax.experimental.pallas import tpu as pltpu


def _basic_block_kernel(x_ref, w1_ref, b1_ref, w2_ref, b2_ref, out_ref, pad_ref):
    """One grid step == one image (N is the grid axis).

    x_ref   : (1, H, W*C)   bf16  lane-dense input slab (also provides the residual)
    w1_ref  : (3, W*C, W*C) bf16  conv1 block-banded weights (BN1 scale folded), one per dy
    b1_ref  : (1, W*C)      f32   folded BN1 bias, tiled over w
    w2_ref  : (3, W*C, W*C) bf16  conv2 block-banded weights (BN2 scale folded), one per dy
    b2_ref  : (1, W*C)      f32   folded BN2 bias, tiled over w
    out_ref : (1, H, W*C)   bf16
    pad_ref : (H+2, W*C)    bf16  H-halo-padded scratch, reused for both convs
    """
    H = out_ref.shape[1]
    WC = pad_ref.shape[1]

    # H-halo zero rows.  The W boundary is already encoded in the banded weights,
    # so rows are the only padding needed (minimal halo-zeroing work).
    zrow = jnp.zeros((1, WC), jnp.bfloat16)
    pad_ref[0:1, :] = zrow
    pad_ref[H + 1:H + 2, :] = zrow

    def conv3x3(w_ref):
        # out[h] = sum_dy  pad[h+dy] @ band[dy]   -- M=H, K=N=W*C, f32 accumulation.
        acc = jnp.dot(pad_ref[0:H, :], w_ref[0], preferred_element_type=jnp.float32)
        acc = acc + jnp.dot(pad_ref[1:1 + H, :], w_ref[1],
                            preferred_element_type=jnp.float32)
        acc = acc + jnp.dot(pad_ref[2:2 + H, :], w_ref[2],
                            preferred_element_type=jnp.float32)
        return acc

    # ---- conv1 (BN1 scale pre-folded) + bias + relu ----
    pad_ref[1:1 + H, :] = x_ref[0]
    h = jnp.maximum(conv3x3(w1_ref) + b1_ref[...], 0.0)          # (H, W*C) f32

    # ---- conv2 (BN2 scale pre-folded) + bias + residual + relu ----
    pad_ref[1:1 + H, :] = h.astype(jnp.bfloat16)                 # halo rows stay zero
    out = conv3x3(w2_ref) + b2_ref[...] + x_ref[0].astype(jnp.float32)
    out_ref[0] = jnp.maximum(out, 0.0).astype(out_ref.dtype)     # unmasked 128-lane store


def _fold_bn_to_band(w_oihw, gamma, beta, mean, var, W, eps=1e-5):
    """PyTorch conv weight (Cout, Cin, 3, 3) + eval-mode BN params ->
       block-banded bf16 weights (3, W*Cin, W*Cout) (BN scale folded, W boundary
       encoded as missing/zero band entries) and f32 bias (1, W*Cout) tiled over w."""
    cout, cin = w_oihw.shape[0], w_oihw.shape[1]
    scale = gamma / jnp.sqrt(var + eps)                           # (Cout,)
    w_hwio = jnp.transpose(w_oihw, (2, 3, 1, 0)) * scale          # (3,3,Cin,Cout)*s[co]
    bias = beta - mean * scale                                    # (Cout,)

    bands = []
    for dy in range(3):
        band = jnp.zeros((W * cin, W * cout), jnp.float32)
        for dx in range(3):
            # out column w_out reads input column w_in = w_out + dx - 1 (if in range).
            shift = jnp.eye(W, W, k=1 - dx, dtype=jnp.float32)    # (W, W)
            band = band + jnp.kron(shift, w_hwio[dy, dx])         # (W*Cin, W*Cout)
        bands.append(band)
    band_stack = jnp.stack(bands).astype(jnp.bfloat16)            # (3, W*Cin, W*Cout)
    bias_full = jnp.tile(bias, W).reshape(1, W * cout).astype(jnp.float32)
    return band_stack, bias_full


def basic_block_pallas(x_nchw, params):
    """x_nchw: (N, C, H, W) float32. Returns (N, C, H, W) float32."""
    w1, g1, be1, m1, v1, w2, g2, be2, m2, v2 = params
    N, C, H, W = x_nchw.shape
    WC = W * C

    # Single fused layout pass: NCHW f32 -> lane-dense (N, H, W*C) bf16 slab.
    # TODO(synk): in a full model keep activations in this layout end-to-end and drop
    #             the per-block conversions entirely.
    x_slab = jnp.transpose(x_nchw, (0, 2, 3, 1)).reshape(N, H, WC).astype(jnp.bfloat16)

    w1_band, b1 = _fold_bn_to_band(w1, g1, be1, m1, v1, W)
    w2_band, b2 = _fold_bn_to_band(w2, g2, be2, m2, v2, W)

    out_slab = pl.pallas_call(
        _basic_block_kernel,
        out_shape=jax.ShapeDtypeStruct((N, H, WC), jnp.bfloat16),
        grid_spec=pltpu.PrefetchScalarGridSpec(
            num_scalar_prefetch=0,
            grid=(N,),                                   # N>=2 -> both v7x TCs used
            in_specs=[
                pl.BlockSpec((1, H, WC), lambda n: (n, 0, 0)),
                pl.BlockSpec((3, WC, WC), lambda n: (0, 0, 0)),
                pl.BlockSpec((1, WC), lambda n: (0, 0)),
                pl.BlockSpec((3, WC, WC), lambda n: (0, 0, 0)),
                pl.BlockSpec((1, WC), lambda n: (0, 0)),
            ],
            out_specs=pl.BlockSpec((1, H, WC), lambda n: (n, 0, 0)),
            scratch_shapes=[pltpu.VMEM((H + 2, WC), jnp.bfloat16)],
        ),
        compiler_params=pltpu.CompilerParams(
            dimension_semantics=("parallel",),
            vmem_limit_bytes=32 * 1024 * 1024),
    )(x_slab, w1_band, b1, w2_band, b2)

    # Back to the module's NCHW f32 interface (single fused layout pass).
    out = out_slab.reshape(N, H, W, C).astype(jnp.float32)
    return jnp.transpose(out, (0, 3, 1, 2))


# ------------------------- references for self-checking -------------------------

def basic_block_ref_f32(x, params):
    """PyTorch-faithful plain-JAX reference in f32 (NCHW)."""
    w1, g1, be1, m1, v1, w2, g2, be2, m2, v2 = params
    eps = 1e-5

    def conv3x3(h, w):
        return lax.conv_general_dilated(
            h, w, (1, 1), ((1, 1), (1, 1)),
            dimension_numbers=("NCHW", "OIHW", "NCHW"),
            precision=lax.Precision.HIGHEST)

    def bn(h, g, b, m, v):
        g, b, m, v = (t.reshape(1, -1, 1, 1) for t in (g, b, m, v))
        return (h - m) / jnp.sqrt(v + eps) * g + b

    out = jax.nn.relu(bn(conv3x3(x, w1), g1, be1, m1, v1))
    out = bn(conv3x3(out, w2), g2, be2, m2, v2)
    return jax.nn.relu(out + x)


def basic_block_ref_mirror(x_nchw, params):
    """Reference mirroring the kernel's numerics exactly: same banded bf16 weights,
    bf16 inputs/intermediate/output rounding, f32 accumulation."""
    w1, g1, be1, m1, v1, w2, g2, be2, m2, v2 = params
    N, C, H, W = x_nchw.shape
    WC = W * C
    w1b, b1 = _fold_bn_to_band(w1, g1, be1, m1, v1, W)
    w2b, b2 = _fold_bn_to_band(w2, g2, be2, m2, v2, W)
    x_slab = jnp.transpose(x_nchw, (0, 2, 3, 1)).reshape(N, H, WC).astype(jnp.bfloat16)

    def conv(slab_bf16, band_bf16):
        pad = jnp.pad(slab_bf16.astype(jnp.float32), ((0, 0), (1, 1), (0, 0)))
        bandf = band_bf16.astype(jnp.float32)
        acc = jnp.zeros((N, H, WC), jnp.float32)
        for dy in range(3):
            acc = acc + jnp.einsum('nhk,kc->nhc', pad[:, dy:dy + H, :], bandf[dy],
                                   precision=lax.Precision.HIGHEST)
        return acc

    h = jax.nn.relu(conv(x_slab, w1b) + b1)
    hb = h.astype(jnp.bfloat16)
    out = jax.nn.relu(conv(hb, w2b) + b2 + x_slab.astype(jnp.float32))
    out = out.astype(jnp.bfloat16).astype(jnp.float32)
    return jnp.transpose(out.reshape(N, H, W, C), (0, 3, 1, 2))


if __name__ == "__main__":
    # inplanes == planes, stride=1, downsample=None; W*C = 128 (one full lane row).
    N, C, H, W = 2, 8, 16, 16
    key = jax.random.PRNGKey(0)
    ks = jax.random.split(key, 7)

    x = jax.random.normal(ks[0], (N, C, H, W), jnp.float32)

    w1 = jax.random.normal(ks[1], (C, C, 3, 3), jnp.float32) * 0.1
    w2 = jax.random.normal(ks[2], (C, C, 3, 3), jnp.float32) * 0.1
    g1 = 1.0 + 0.1 * jax.random.normal(ks[3], (C,), jnp.float32)
    be1 = 0.1 * jax.random.normal(ks[4], (C,), jnp.float32)
    m1 = jnp.zeros((C,), jnp.float32)
    v1 = jnp.ones((C,), jnp.float32)
    g2 = 1.0 + 0.1 * jax.random.normal(ks[5], (C,), jnp.float32)
    be2 = 0.1 * jax.random.normal(ks[6], (C,), jnp.float32)
    m2 = jnp.zeros((C,), jnp.float32)
    v2 = jnp.ones((C,), jnp.float32)

    params = (w1, g1, be1, m1, v1, w2, g2, be2, m2, v2)

    out = jax.block_until_ready(basic_block_pallas(x, params))
    assert out.shape == (N, C, H, W) and out.dtype == jnp.float32

    # Tight check against a reference that mirrors the kernel's bf16/f32 numerics.
    ref_m = jax.block_until_ready(basic_block_ref_mirror(x, params))
    assert jnp.allclose(out, ref_m, atol=5e-2, rtol=2e-2), float(
        jnp.max(jnp.abs(out - ref_m)))

    # Loose check against the PyTorch-faithful f32 reference (difference is only the
    # bf16 rounding of MXU inputs/intermediate/output, which is intentional).
    ref_f = jax.block_until_ready(basic_block_ref_f32(x, params))
    assert jnp.allclose(out, ref_f, atol=0.15, rtol=0.1), float(
        jnp.max(jnp.abs(out - ref_f)))

    # Statistic from the module's debug print (computed silently, not printed).
    residual = x
    _stat = (jnp.abs(out - residual).mean()
             / (jnp.abs(out).mean() + jnp.abs(residual).mean()) / 2)
    _ = jax.block_until_ready(_stat)

    print("KERNEL_OK")
</pallas_src>

<mosaic_0001>
module attributes {stable_mosaic.version = 11 : i64} {
  func.func @_basic_block_kernel(%arg0: i32, %arg1: memref<1x16x128xbf16, #tpu.memory_space<vmem>>, %arg2: memref<3x128x128xbf16, #tpu.memory_space<vmem>>, %arg3: memref<1x128xf32, #tpu.memory_space<vmem>>, %arg4: memref<3x128x128xbf16, #tpu.memory_space<vmem>>, %arg5: memref<1x128xf32, #tpu.memory_space<vmem>>, %arg6: memref<1x16x128xbf16, #tpu.memory_space<vmem>>, %arg7: memref<18x128xbf16, #tpu.memory_space<vmem>>) attributes {dimension_semantics = [#tpu.dimension_semantics<parallel>], iteration_bounds = array<i64: 2>, scalar_prefetch = 0 : i64, scratch_operands = 1 : i64, tpu.core_type = #tpu.core_type<tc>, window_params = [{transform_indices = @transform_0, window_bounds = array<i64: 1, 16, 128>}, {pipeline_mode = #tpu.pipeline_mode<synchronous>, transform_indices = @transform_1, window_bounds = array<i64: 3, 128, 128>}, {pipeline_mode = #tpu.pipeline_mode<synchronous>, transform_indices = @transform_2, window_bounds = array<i64: 1, 128>}, {pipeline_mode = #tpu.pipeline_mode<synchronous>, transform_indices = @transform_3, window_bounds = array<i64: 3, 128, 128>}, {pipeline_mode = #tpu.pipeline_mode<synchronous>, transform_indices = @transform_4, window_bounds = array<i64: 1, 128>}, {transform_indices = @transform_5, window_bounds = array<i64: 1, 16, 128>}]} {
    %cst = arith.constant 0.000000e+00 : bf16
    %0 = vector.broadcast %cst : bf16 to vector<1x128xbf16>
    %c0 = arith.constant 0 : index
    %c0_0 = arith.constant 0 : index
    %1 = vector.load %arg7[%c0, %c0_0] : memref<18x128xbf16, #tpu.memory_space<vmem>>, vector<1x128xbf16>
    tpu.vector_store %arg7[%c0, %c0_0], %0 {strides = array<i32>} : memref<18x128xbf16, #tpu.memory_space<vmem>>, vector<1x128xbf16>,
    %c17 = arith.constant 17 : index
    %c0_1 = arith.constant 0 : index
    %2 = vector.load %arg7[%c17, %c0_1] : memref<18x128xbf16, #tpu.memory_space<vmem>>, vector<1x128xbf16>
    tpu.vector_store %arg7[%c17, %c0_1], %0 {strides = array<i32>} : memref<18x128xbf16, #tpu.memory_space<vmem>>, vector<1x128xbf16>,
    %c0_2 = arith.constant 0 : index
    %c0_3 = arith.constant 0 : index
    %c0_4 = arith.constant 0 : index
    %3 = vector.load %arg1[%c0_2, %c0_3, %c0_4] : memref<1x16x128xbf16, #tpu.memory_space<vmem>>, vector<1x16x128xbf16>
    %4 = vector.shape_cast %3 : vector<1x16x128xbf16> to vector<16x128xbf16>
    %c1 = arith.constant 1 : index
    %c0_5 = arith.constant 0 : index
    %5 = vector.load %arg7[%c1, %c0_5] : memref<18x128xbf16, #tpu.memory_space<vmem>>, vector<16x128xbf16>
    tpu.vector_store %arg7[%c1, %c0_5], %4 {strides = array<i32>} : memref<18x128xbf16, #tpu.memory_space<vmem>>, vector<16x128xbf16>,
    %c0_6 = arith.constant 0 : index
    %c0_7 = arith.constant 0 : index
    %6 = vector.load %arg7[%c0_6, %c0_7] : memref<18x128xbf16, #tpu.memory_space<vmem>>, vector<16x128xbf16>
    %c0_8 = arith.constant 0 : index
    %c0_9 = arith.constant 0 : index
    %c0_10 = arith.constant 0 : index
    %7 = vector.load %arg2[%c0_8, %c0_9, %c0_10] : memref<3x128x128xbf16, #tpu.memory_space<vmem>>, vector<1x128x128xbf16>
    %8 = vector.shape_cast %7 : vector<1x128x128xbf16> to vector<128x128xbf16>
    %cst_11 = arith.constant dense<0.000000e+00> : vector<16x128xf32>
    %9 = tpu.matmul %6, %8, %cst_11 {dimension_numbers = #tpu.dot_dimension_numbers<[1], [0], [0], [1], [0, 0, 1, 1], [], []>} : vector<16x128xbf16>, vector<128x128xbf16>, vector<16x128xf32> -> vector<16x128xf32>
    %c1_12 = arith.constant 1 : index
    %c0_13 = arith.constant 0 : index
    %10 = vector.load %arg7[%c1_12, %c0_13] : memref<18x128xbf16, #tpu.memory_space<vmem>>, vector<16x128xbf16>
    %c1_14 = arith.constant 1 : index
    %c0_15 = arith.constant 0 : index
    %c0_16 = arith.constant 0 : index
    %11 = vector.load %arg2[%c1_14, %c0_15, %c0_16] : memref<3x128x128xbf16, #tpu.memory_space<vmem>>, vector<1x128x128xbf16>
    %12 = vector.shape_cast %11 : vector<1x128x128xbf16> to vector<128x128xbf16>
    %cst_17 = arith.constant dense<0.000000e+00> : vector<16x128xf32>
    %13 = tpu.matmul %10, %12, %cst_17 {dimension_numbers = #tpu.dot_dimension_numbers<[1], [0], [0], [1], [0, 0, 1, 1], [], []>} : vector<16x128xbf16>, vector<128x128xbf16>, vector<16x128xf32> -> vector<16x128xf32>
    %14 = arith.addf %9, %13 : vector<16x128xf32>
    %c2 = arith.constant 2 : index
    %c0_18 = arith.constant 0 : index
    %15 = vector.load %arg7[%c2, %c0_18] : memref<18x128xbf16, #tpu.memory_space<vmem>>, vector<16x128xbf16>
    %c2_19 = arith.constant 2 : index
    %c0_20 = arith.constant 0 : index
    %c0_21 = arith.constant 0 : index
    %16 = vector.load %arg2[%c2_19, %c0_20, %c0_21] : memref<3x128x128xbf16, #tpu.memory_space<vmem>>, vector<1x128x128xbf16>
    %17 = vector.shape_cast %16 : vector<1x128x128xbf16> to vector<128x128xbf16>
    %cst_22 = arith.constant dense<0.000000e+00> : vector<16x128xf32>
    %18 = tpu.matmul %15, %17, %cst_22 {dimension_numbers = #tpu.dot_dimension_numbers<[1], [0], [0], [1], [0, 0, 1, 1], [], []>} : vector<16x128xbf16>, vector<128x128xbf16>, vector<16x128xf32> -> vector<16x128xf32>
    %19 = arith.addf %14, %18 : vector<16x128xf32>
    %c0_23 = arith.constant 0 : index
    %c0_24 = arith.constant 0 : index
    %20 = vector.load %arg3[%c0_23, %c0_24] : memref<1x128xf32, #tpu.memory_space<vmem>>, vector<1x128xf32>
    %21 = vector.broadcast %20 : vector<1x128xf32> to vector<16x128xf32>
    %22 = arith.addf %19, %21 : vector<16x128xf32>
    %cst_25 = arith.constant 0.000000e+00 : f32
    %23 = vector.broadcast %cst_25 : f32 to vector<16x128xf32>
    %24 = arith.maximumf %22, %23 : vector<16x128xf32>
    %25 = arith.truncf %24 : vector<16x128xf32> to vector<16x128xbf16>
    %c1_26 = arith.constant 1 : index
    %c0_27 = arith.constant 0 : index
    %26 = vector.load %arg7[%c1_26, %c0_27] : memref<18x128xbf16, #tpu.memory_space<vmem>>, vector<16x128xbf16>
    tpu.vector_store %arg7[%c1_26, %c0_27], %25 {strides = array<i32>} : memref<18x128xbf16, #tpu.memory_space<vmem>>, vector<16x128xbf16>,
    %c0_28 = arith.constant 0 : index
    %c0_29 = arith.constant 0 : index
    %27 = vector.load %arg7[%c0_28, %c0_29] : memref<18x128xbf16, #tpu.memory_space<vmem>>, vector<16x128xbf16>
    %c0_30 = arith.constant 0 : index
    %c0_31 = arith.constant 0 : index
    %c0_32 = arith.constant 0 : index
    %28 = vector.load %arg4[%c0_30, %c0_31, %c0_32] : memref<3x128x128xbf16, #tpu.memory_space<vmem>>, vector<1x128x128xbf16>
    %29 = vector.shape_cast %28 : vector<1x128x128xbf16> to vector<128x128xbf16>
    %cst_33 = arith.constant dense<0.000000e+00> : vector<16x128xf32>
    %30 = tpu.matmul %27, %29, %cst_33 {dimension_numbers = #tpu.dot_dimension_numbers<[1], [0], [0], [1], [0, 0, 1, 1], [], []>} : vector<16x128xbf16>, vector<128x128xbf16>, vector<16x128xf32> -> vector<16x128xf32>
    %c1_34 = arith.constant 1 : index
    %c0_35 = arith.constant 0 : index
    %31 = vector.load %arg7[%c1_34, %c0_35] : memref<18x128xbf16, #tpu.memory_space<vmem>>, vector<16x128xbf16>
    %c1_36 = arith.constant 1 : index
    %c0_37 = arith.constant 0 : index
    %c0_38 = arith.constant 0 : index
    %32 = vector.load %arg4[%c1_36, %c0_37, %c0_38] : memref<3x128x128xbf16, #tpu.memory_space<vmem>>, vector<1x128x128xbf16>
    %33 = vector.shape_cast %32 : vector<1x128x128xbf16> to vector<128x128xbf16>
    %cst_39 = arith.constant dense<0.000000e+00> : vector<16x128xf32>
    %34 = tpu.matmul %31, %33, %cst_39 {dimension_numbers = #tpu.dot_dimension_numbers<[1], [0], [0], [1], [0, 0, 1, 1], [], []>} : vector<16x128xbf16>, vector<128x128xbf16>, vector<16x128xf32> -> vector<16x128xf32>
    %35 = arith.addf %30, %34 : vector<16x128xf32>
    %c2_40 = arith.constant 2 : index
    %c0_41 = arith.constant 0 : index
    %36 = vector.load %arg7[%c2_40, %c0_41] : memref<18x128xbf16, #tpu.memory_space<vmem>>, vector<16x128xbf16>
    %c2_42 = arith.constant 2 : index
    %c0_43 = arith.constant 0 : index
    %c0_44 = arith.constant 0 : index
    %37 = vector.load %arg4[%c2_42, %c0_43, %c0_44] : memref<3x128x128xbf16, #tpu.memory_space<vmem>>, vector<1x128x128xbf16>
    %38 = vector.shape_cast %37 : vector<1x128x128xbf16> to vector<128x128xbf16>
    %cst_45 = arith.constant dense<0.000000e+00> : vector<16x128xf32>
    %39 = tpu.matmul %36, %38, %cst_45 {dimension_numbers = #tpu.dot_dimension_numbers<[1], [0], [0], [1], [0, 0, 1, 1], [], []>} : vector<16x128xbf16>, vector<128x128xbf16>, vector<16x128xf32> -> vector<16x128xf32>
    %40 = arith.addf %35, %39 : vector<16x128xf32>
    %c0_46 = arith.constant 0 : index
    %c0_47 = arith.constant 0 : index
    %41 = vector.load %arg5[%c0_46, %c0_47] : memref<1x128xf32, #tpu.memory_space<vmem>>, vector<1x128xf32>
    %42 = vector.broadcast %41 : vector<1x128xf32> to vector<16x128xf32>
    %43 = arith.addf %40, %42 : vector<16x128xf32>
    %c0_48 = arith.constant 0 : index
    %c0_49 = arith.constant 0 : index
    %c0_50 = arith.constant 0 : index
    %44 = vector.load %arg1[%c0_48, %c0_49, %c0_50] : memref<1x16x128xbf16, #tpu.memory_space<vmem>>, vector<1x16x128xbf16>
    %45 = vector.shape_cast %44 : vector<1x16x128xbf16> to vector<16x128xbf16>
    %46 = arith.extf %45 : vector<16x128xbf16> to vector<16x128xf32>
    %47 = arith.addf %43, %46 : vector<16x128xf32>
    %cst_51 = arith.constant 0.000000e+00 : f32
    %48 = vector.broadcast %cst_51 : f32 to vector<16x128xf32>
    %49 = arith.maximumf %47, %48 : vector<16x128xf32>
    %50 = arith.truncf %49 : vector<16x128xf32> to vector<16x128xbf16>
    %c0_52 = arith.constant 0 : index
    %c0_53 = arith.constant 0 : index
    %c0_54 = arith.constant 0 : index
    %51 = vector.load %arg6[%c0_52, %c0_53, %c0_54] : memref<1x16x128xbf16, #tpu.memory_space<vmem>>, vector<1x16x128xbf16>
    %52 = vector.shape_cast %51 : vector<1x16x128xbf16> to vector<16x128xbf16>
    %53 = vector.shape_cast %50 : vector<16x128xbf16> to vector<1x16x128xbf16>
    tpu.vector_store %arg6[%c0_52, %c0_53, %c0_54], %53 {strides = array<i32>} : memref<1x16x128xbf16, #tpu.memory_space<vmem>>, vector<1x16x128xbf16>,
    return
  }
  func.func @transform_0(%arg0: i32) -> (i32, i32, i32) {
    %c0_i32 = arith.constant 0 : i32
    %c0_i32_0 = arith.constant 0 : i32
    %c0_i32_1 = arith.constant 0 : i32
    return %arg0, %c0_i32, %c0_i32_0 : i32, i32, i32
  }
  func.func @transform_1(%arg0: i32) -> (i32, i32, i32) {
    %c0_i32 = arith.constant 0 : i32
    %c0_i32_0 = arith.constant 0 : i32
    %c0_i32_1 = arith.constant 0 : i32
    %c0_i32_2 = arith.constant 0 : i32
    return %c0_i32, %c0_i32_0, %c0_i32_1 : i32, i32, i32
  }
  func.func @transform_2(%arg0: i32) -> (i32, i32) {
    %c0_i32 = arith.constant 0 : i32
    %c0_i32_0 = arith.constant 0 : i32
    %c0_i32_1 = arith.constant 0 : i32
    return %c0_i32, %c0_i32_0 : i32, i32
  }
  func.func @transform_3(%arg0: i32) -> (i32, i32, i32) {
    %c0_i32 = arith.constant 0 : i32
    %c0_i32_0 = arith.constant 0 : i32
    %c0_i32_1 = arith.constant 0 : i32
    %c0_i32_2 = arith.constant 0 : i32
    return %c0_i32, %c0_i32_0, %c0_i32_1 : i32, i32, i32
  }
  func.func @transform_4(%arg0: i32) -> (i32, i32) {
    %c0_i32 = arith.constant 0 : i32
    %c0_i32_0 = arith.constant 0 : i32
    %c0_i32_1 = arith.constant 0 : i32
    return %c0_i32, %c0_i32_0 : i32, i32
  }
  func.func @transform_5(%arg0: i32) -> (i32, i32, i32) {
    %c0_i32 = arith.constant 0 : i32
    %c0_i32_0 = arith.constant 0 : i32
    %c0_i32_1 = arith.constant 0 : i32
    return %arg0, %c0_i32, %c0_i32_0 : i32, i32, i32
  }
}

</mosaic_0001>

<llo_original>
// kernel: tpu_custom_call.1
$region0: #{tpu_custom_call.1}
  #allocation0 [shape = 'u32[]', space=smem, size = 0x4, offset = 0x4, fixed_abs, tag = 'smem constant byte address 0x4 - core index']
  #allocation1 [shape = 'u32[144,128]{1,0:T(1,128)}', space=vmem, size = 0x12000, scoped, tag = 'internal scratch']
  #allocation2 [shape = 'bf16[18,128]{1,0:T(8,128)(2,1)}', space=vmem, size = 0x1800, scoped, tag = 'scratch operand']
  %s0 = inlined_call_operand.hbm [shape: bf16[2,16,128], index: 0, kind: input, shape index: {}]
  %s1 = inlined_call_operand.hbm [shape: bf16[3,128,128], index: 1, kind: input, shape index: {}]
  %s2 = inlined_call_operand.vmem [shape: f32[1,128], index: 2, kind: input, shape index: {}]
  %s3 = inlined_call_operand.hbm [shape: bf16[3,128,128], index: 3, kind: input, shape index: {}]
  %s4 = inlined_call_operand.vmem [shape: f32[1,128], index: 4, kind: input, shape index: {}]
  %s5 = inlined_call_operand.hbm [shape: bf16[2,16,128], index: 5, kind: output, shape index: {}]
  %s6 = sld [smem:[#allocation0]]
  $region65: #{tpu_custom_call.1} parent=0
    _
  %s8 = ssub.s32 1, %s6
  %s9 = scalar_select 0, %s8, %s6
  $region1: #{tpu_custom_call.1} parent=0
    #allocation3 [shape = 'u8[8192]{0}', space=vmem, size = 0x2000, scoped, tag = 'input window, operand 0']
    #allocation4 [shape = 's32[2]{0}', space=sflag, size = 0x8, scoped, tag = 'scoped memory for tpu_custom_call.1']
    #allocation5 [shape = 's32[2]{0}', space=sflag, size = 0x8, scoped, tag = 'scoped memory for tpu_custom_call.1']
    #allocation6 [shape = 'u8[98304]{0}', space=vmem, size = 0x18000, scoped, tag = 'input window, operand 1, single buffered']
    #allocation7 [shape = 's32[1]{0}', space=sflag, size = 0x4, scoped, tag = 'scoped memory for tpu_custom_call.1']
    #allocation8 [shape = 'u8[98304]{0}', space=vmem, size = 0x18000, scoped, tag = 'input window, operand 3, single buffered']
    #allocation9 [shape = 'u8[8192]{0}', space=vmem, size = 0x2000, scoped, tag = 'output window, operand 0']
    %10 = vsyncpa [#allocation4], 0
    %s11 = scalar_lea.sflag [#allocation4], 1
    %12 = vsyncpa %s11, 0
    %13 = vsyncpa [#allocation7], 0
    %14 = vsyncpa [#allocation5], 0
    %s15 = scalar_lea.sflag [#allocation5], 1
    %16 = vsyncpa %s15, 0
    loop: start=0, step=1, limit=4
    $region2: #{tpu_custom_call.1} parent=1 // loop_pre_header
      _
    $region3: #{tpu_custom_call.1} parent=1 // loop_header
      %s18 = sphi 0, %s22
      %p19 = scmp.ge.s32.totalorder %s18, 4
      %s28 = sphi 0, %s30
      %s31 = sphi 0, %s28
      %s32 = sphi 0, %s31
      %s48 = sphi 0, %s32
      %s52 = sphi 0, %s52
      %s54 = sphi 0, %s52
      %s55 = sphi 0, %s54
      %s69 = sphi 0, %s55
      %s73 = sphi 0, %s73
      %s75 = sphi 0, %s73
      %s76 = sphi 0, %s75
      %s90 = sphi 0, %s76
      %s94 = sphi 0, %s94
      %s96 = sphi 0, %s94
      %s97 = sphi 0, %s96
      %s111 = sphi 0, %s97
      %s115 = sphi 0, %s115
      %s117 = sphi 0, %s115
      %s118 = sphi 0, %s117
      %s132 = sphi 0, %s118
      %s138 = sphi 0, %s140
      %s141 = sphi 0, %s138
      %s142 = sphi 0, %s141
      %s158 = sphi 0, %s142
    $region4: #{tpu_custom_call.1} parent=1 // loop_header_branch
      %21 = sbr.rel (%p19) target = $region8
    $region5: #{tpu_custom_call.1} parent=1 // loop_body
      %s23 = ssub.s32 %s18, 1
      %s24 = ssub.s32 %s18, 2
      %s25 = sadd.s32 %s18, 1
      %s26 = ssub.s32 %s18, %s25
      %p27 = scmp.eq.s32.totalorder %s26, 0
      %s29 = sadd.s32 %s28, 1
      %s30 = scalar_select %p27, %s28, %s29
      %p33 = pneg %p27
      %p34 = scmp.eq.s32.totalorder %s18, 1
      %p35 = por %p33, %p34
      %p36 = scmp.ne.s32.totalorder %s28, %s31
      %p37 = scmp.eq.s32.totalorder %s18, 0
      %p38 = por %p36, %p37
      %p39 = scmp.ne.s32.totalorder %s28, %s31
      %p40 = scmp.eq.s32.totalorder %s23, 1
      %p41 = por %p39, %p40
      %p42 = scmp.ne.s32.totalorder %s31, %s32
      %p43 = scmp.eq.s32.totalorder %s23, 0
      %p44 = por %p42, %p43
      %p45 = scmp.ne.s32.totalorder %s31, %s32
      %p46 = scmp.eq.s32.totalorder %s24, 1
      %p47 = por %p45, %p46
      %p49 = scmp.ne.s32.totalorder %s32, %s48
      %p50 = scmp.eq.s32.totalorder %s24, 0
      %p51 = por %p49, %p50
      %s53 = sadd.s32 %s52, 1
      %p56 = scmp.eq.s32.totalorder %s18, 1
      %p57 = scmp.ne.s32.totalorder %s52, %s54
      %p58 = scmp.eq.s32.totalorder %s18, 0
      %p59 = por %p57, %p58
      %p60 = scmp.ne.s32.totalorder %s52, %s54
      %p61 = scmp.eq.s32.totalorder %s23, 1
      %p62 = por %p60, %p61
      %p63 = scmp.ne.s32.totalorder %s54, %s55
      %p64 = scmp.eq.s32.totalorder %s23, 0
      %p65 = por %p63, %p64
      %p66 = scmp.ne.s32.totalorder %s54, %s55
      %p67 = scmp.eq.s32.totalorder %s24, 1
      %p68 = por %p66, %p67
      %p70 = scmp.ne.s32.totalorder %s55, %s69
      %p71 = scmp.eq.s32.totalorder %s24, 0
      %p72 = por %p70, %p71
      %s74 = sadd.s32 %s73, 1
      %p77 = scmp.eq.s32.totalorder %s18, 1
      %p78 = scmp.ne.s32.totalorder %s73, %s75
      %p79 = scmp.eq.s32.totalorder %s18, 0
      %p80 = por %p78, %p79
      %p81 = scmp.ne.s32.totalorder %s73, %s75
      %p82 = scmp.eq.s32.totalorder %s23, 1
      %p83 = por %p81, %p82
      %p84 = scmp.ne.s32.totalorder %s75, %s76
      %p85 = scmp.eq.s32.totalorder %s23, 0
      %p86 = por %p84, %p85
      %p87 = scmp.ne.s32.totalorder %s75, %s76
      %p88 = scmp.eq.s32.totalorder %s24, 1
      %p89 = por %p87, %p88
      %p91 = scmp.ne.s32.totalorder %s76, %s90
      %p92 = scmp.eq.s32.totalorder %s24, 0
      %p93 = por %p91, %p92
      %s95 = sadd.s32 %s94, 1
      %p98 = scmp.eq.s32.totalorder %s18, 1
      %p99 = scmp.ne.s32.totalorder %s94, %s96
      %p100 = scmp.eq.s32.totalorder %s18, 0
      %p101 = por %p99, %p100
      %p102 = scmp.ne.s32.totalorder %s94, %s96
      %p103 = scmp.eq.s32.totalorder %s23, 1
      %p104 = por %p102, %p103
      %p105 = scmp.ne.s32.totalorder %s96, %s97
      %p106 = scmp.eq.s32.totalorder %s23, 0
      %p107 = por %p105, %p106
      %p108 = scmp.ne.s32.totalorder %s96, %s97
      %p109 = scmp.eq.s32.totalorder %s24, 1
      %p110 = por %p108, %p109
      %p112 = scmp.ne.s32.totalorder %s97, %s111
      %p113 = scmp.eq.s32.totalorder %s24, 0
      %p114 = por %p112, %p113
      %s116 = sadd.s32 %s115, 1
      %p119 = scmp.eq.s32.totalorder %s18, 1
      %p120 = scmp.ne.s32.totalorder %s115, %s117
      %p121 = scmp.eq.s32.totalorder %s18, 0
      %p122 = por %p120, %p121
      %p123 = scmp.ne.s32.totalorder %s115, %s117
      %p124 = scmp.eq.s32.totalorder %s23, 1
      %p125 = por %p123, %p124
      %p126 = scmp.ne.s32.totalorder %s117, %s118
      %p127 = scmp.eq.s32.totalorder %s23, 0
      %p128 = por %p126, %p127
      %p129 = scmp.ne.s32.totalorder %s117, %s118
      %p130 = scmp.eq.s32.totalorder %s24, 1
      %p131 = por %p129, %p130
      %p133 = scmp.ne.s32.totalorder %s118, %s132
      %p134 = scmp.eq.s32.totalorder %s24, 0
      %p135 = por %p133, %p134
      %s136 = ssub.s32 %s18, %s25
      %p137 = scmp.eq.s32.totalorder %s136, 0
      %s139 = sadd.s32 %s138, 1
      %s140 = scalar_select %p137, %s138, %s139
      %p143 = pneg %p137
      %p144 = scmp.eq.s32.totalorder %s18, 1
      %p145 = por %p143, %p144
      %p146 = scmp.ne.s32.totalorder %s138, %s141
      %p147 = scmp.eq.s32.totalorder %s18, 0
      %p148 = por %p146, %p147
      %p149 = scmp.ne.s32.totalorder %s138, %s141
      %p150 = scmp.eq.s32.totalorder %s23, 1
      %p151 = por %p149, %p150
      %p152 = scmp.ne.s32.totalorder %s141, %s142
      %p153 = scmp.eq.s32.totalorder %s23, 0
      %p154 = por %p152, %p153
      %p155 = scmp.ne.s32.totalorder %s141, %s142
      %p156 = scmp.eq.s32.totalorder %s24, 1
      %p157 = por %p155, %p156
      %p159 = scmp.ne.s32.totalorder %s142, %s158
      %p160 = scmp.eq.s32.totalorder %s24, 0
      %p161 = por %p159, %p160
      %p162 = scmp.le.s32.totalorder 1, %s18
      %p163 = scmp.lt.s32.totalorder %s18, 3
      %p164 = pnand %p162, %p163
      %p165 = pneg %p164
      // Predicated region
      $region9: #{tpu_custom_call.1} parent=5 // pred_check
        _
      $region10: #{tpu_custom_call.1} parent=5 // pred_check_branch
        %167 = sbr.rel (%p164) target = $region12
      $region11: #{tpu_custom_call.1} parent=5 // pred_region
        %s168 = ssub.s32 %s18, 1
        // Predicated region
        $region13: #{tpu_custom_call.1} parent=11 // pred_check
          %p169 = pneg %p65
        $region14: #{tpu_custom_call.1} parent=11 // pred_check_branch
          %171 = sbr.rel (%p169) target = $region16
        $region15: #{tpu_custom_call.1} parent=11 // pred_region
          %s173 = ssub.s32 3072, 3072
          %174 = vsyncadd [#allocation7], %s173
          %s175 = sshll.u32 [#allocation6], 4
          %s176 = int_to_ptr.vmem [resolvable:$true] %s175
          %181 = dma.hbm_to_vmem [thread:$0]  %s1, 3072, %s176, [#allocation7], 64, 64, 4
        $region16: #{tpu_custom_call.1} parent=11 // pred_fallthru
          _
        // Predicated region
        $region17: #{tpu_custom_call.1} parent=11 // pred_check
          %p182 = pneg %p86
        $region18: #{tpu_custom_call.1} parent=11 // pred_check_branch
          %184 = sbr.rel (%p182) target = $region20
        $region19: #{tpu_custom_call.1} parent=11 // pred_region
          _
        $region20: #{tpu_custom_call.1} parent=11 // pred_fallthru
          _
        // Predicated region
        $region21: #{tpu_custom_call.1} parent=11 // pred_check
          %p185 = pneg %p107
        $region22: #{tpu_custom_call.1} parent=11 // pred_check_branch
          %187 = sbr.rel (%p185) target = $region24
        $region23: #{tpu_custom_call.1} parent=11 // pred_region
          %s189 = ssub.s32 3072, 3072
          %190 = vsyncadd [#allocation7], %s189
          %s191 = sshll.u32 [#allocation8], 4
          %s192 = int_to_ptr.vmem [resolvable:$true] %s191
          %197 = dma.hbm_to_vmem [thread:$0]  %s3, 3072, %s192, [#allocation7], 64, 64, 4
        $region24: #{tpu_custom_call.1} parent=11 // pred_fallthru
          _
        // Predicated region
        $region25: #{tpu_custom_call.1} parent=11 // pred_check
          %p198 = pneg %p128
        $region26: #{tpu_custom_call.1} parent=11 // pred_check_branch
          %200 = sbr.rel (%p198) target = $region28
        $region27: #{tpu_custom_call.1} parent=11 // pred_region
          _
        $region28: #{tpu_custom_call.1} parent=11 // pred_fallthru
          _
      $region12: #{tpu_custom_call.1} parent=5 // pred_fallthru
        _
      %p201 = scmp.lt.s32.totalorder %s18, 2
      // Predicated region
      $region29: #{tpu_custom_call.1} parent=5 // pred_check
        %p202 = pneg %p201
      $region30: #{tpu_custom_call.1} parent=5 // pred_check_branch
        %204 = sbr.rel (%p202) target = $region32
      $region31: #{tpu_custom_call.1} parent=5 // pred_region
        // Predicated region
        $region33: #{tpu_custom_call.1} parent=31 // pred_check
          %p205 = pneg %p38
        $region34: #{tpu_custom_call.1} parent=31 // pred_check_branch
          %207 = sbr.rel (%p205) target = $region36
        $region35: #{tpu_custom_call.1} parent=31 // pred_region
          %s208 = sand.u32 %s28, 1
          %s209 = scalar_lea.sflag [#allocation4], %s208
          %s210 = sand.u32 %s28, 1
          %s211 = smul.addr %s210, 8
          %s212 = scalar_lea.vmem [#allocation3], %s211
          %s214 = ssub.s32 128, 128
          %215 = vsyncadd %s209, %s214
          %s216 = smul.addr %s18, 2
          %s217 = smul.addr %s216, 64
          %s218 = scalar_lea.hbm %s0, %s217
          %s219 = sshll.u32 %s212, 4
          %s220 = int_to_ptr.vmem [resolvable:$true] %s219
          %225 = dma.hbm_to_vmem [thread:$0]  %s218, 128, %s220, %s209, 64, 64, 4
        $region36: #{tpu_custom_call.1} parent=31 // pred_fallthru
          _
      $region32: #{tpu_custom_call.1} parent=5 // pred_fallthru
        _
      %p226 = scmp.le.s32.totalorder 1, %s18
      %p227 = scmp.lt.s32.totalorder %s18, 3
      %p228 = pnand %p226, %p227
      %p229 = pneg %p228
      // Predicated region
      $region37: #{tpu_custom_call.1} parent=5 // pred_check
        _
      $region38: #{tpu_custom_call.1} parent=5 // pred_check_branch
        %231 = sbr.rel (%p228) target = $region40
      $region39: #{tpu_custom_call.1} parent=5 // pred_region
        %s232 = ssub.s32 %s18, 1
        %s233 = sand.u32 %s31, 1
        %s234 = scalar_lea.sflag [#allocation4], %s233
        %s235 = sand.u32 %s31, 1
        %s236 = smul.addr %s235, 8
        %s237 = scalar_lea.vmem [#allocation3], %s236
        // Predicated region
        $region41: #{tpu_custom_call.1} parent=39 // pred_check
          %p238 = pneg %p44
        $region42: #{tpu_custom_call.1} parent=39 // pred_check_branch
          %240 = sbr.rel (%p238) target = $region44
        $region43: #{tpu_custom_call.1} parent=39 // pred_region
          %241 = dma.done %s234, 128
        $region44: #{tpu_custom_call.1} parent=39 // pred_fallthru
          _
        // Predicated region
        $region45: #{tpu_custom_call.1} parent=39 // pred_check
          %p242 = pneg %p65
        $region46: #{tpu_custom_call.1} parent=39 // pred_check_branch
          %244 = sbr.rel (%p242) target = $region48
        $region47: #{tpu_custom_call.1} parent=39 // pred_region
          %245 = dma.done [#allocation7], 3072
        $region48: #{tpu_custom_call.1} parent=39 // pred_fallthru
          _
        // Predicated region
        $region49: #{tpu_custom_call.1} parent=39 // pred_check
          %p246 = pneg %p107
        $region50: #{tpu_custom_call.1} parent=39 // pred_check_branch
          %248 = sbr.rel (%p246) target = $region52
        $region51: #{tpu_custom_call.1} parent=39 // pred_region
          %249 = dma.done [#allocation7], 3072
        $region52: #{tpu_custom_call.1} parent=39 // pred_fallthru
          _
        %s250 = sand.u32 %s31, 1
        %s251 = scalar_lea.sflag [#allocation4], %s250
        %s252 = sand.u32 %s31, 1
        %s253 = smul.addr %s252, 8
        %s254 = scalar_lea.vmem [#allocation3], %s253
        %p255 = pneg %p44
        %p256 = pneg %p41
        %p257 = pneg %p65
        %p258 = pneg %p62
        %p259 = pneg %p86
        %p260 = pneg %p83
        %p261 = pneg %p107
        %p262 = pneg %p104
        %p263 = pneg %p128
        %p264 = pneg %p125
        %p265 = pneg %p154
        %p266 = pneg %p151
        %s267 = sand.u32 %s141, 1
        %s268 = scalar_lea.sflag [#allocation5], %s267
        %s269 = sand.u32 %s141, 1
        %s270 = smul.addr %s269, 8
        %s271 = scalar_lea.vmem [#allocation9], %s270
        %vm273 = vcmask 1040384
        %vm274 = vsmask.f32 256
        %vm275 = vmand %vm273, %vm274
        %v276 = vld [vmem:[#allocation2] sm:$0x1]
        %v277 = vsel %vm275, 0, %v276
        %278 = vst [vmem:[#allocation2] sm:$0x1] %v277
        %vm279 = vsmask.f32 7938
        %vm280 = vmand %vm273, %vm279
        %v281 = vld [vmem:[#allocation2 + $0x8] sm:$0x1]
        %v282 = vsel %vm280, 0, %v281
        %283 = vst [vmem:[#allocation2 + $0x8] sm:$0x1] %v282
        %v284 = vld [vmem:[%s237] sm:$0xf]
        %v285 = vld [vmem:[%s237 + $0x4] sm:$0xf]
        %vm286 = vsmask.f32 4368
        %vm287 = vmor %vm274, %vm286
        %v289 = vshrl.u32 %v284, 16
        %v291 = vrot.slane %v289, 7
        %v292 = vshll.u32 %v284, 16
        %v294 = vor.u32 %v291, %v292
        %v295 = vrot.slane %v291, 4
        %v297 = vshrl.u32 %v285, 16
        %v299 = vrot.slane %v297, 7
        %v300 = vshll.u32 %v285, 16
        %v302 = vor.u32 %v299, %v300
        %v303 = vsel %vm287, %v295, %v302
        %v304 = vrot.slane %v299, 4
        %vm308 = vcmask 1043456
        %vm309 = vmand %vm308, %vm279
        %v310 = vld [vmem:[#allocation2] sm:$0xf]
        %v311 = vsel %vm309, %v294, %v310
        %312 = vst [vmem:[#allocation2] sm:$0xf] %v311
        %313 = vst [vmem:[#allocation2 + $0x4] sm:$0xf] %v303
        %v314 = vld [vmem:[#allocation2 + $0x8] sm:$0x1]
        %v315 = vsel %vm275, %v304, %v314
        %316 = vst [vmem:[#allocation2 + $0x8] sm:$0x1] %v315
        %v317 = vld [vmem:[#allocation2] sm:$0xf]
        %v318 = vld [vmem:[#allocation2 + $0x4] sm:$0xf]
        %v319 = vld [vmem:[#allocation6] sm:$0xf]
        %v320 = vld [vmem:[#allocation6 + $0x4] sm:$0xf]
        %v321 = vld [vmem:[#allocation6 + $0x8] sm:$0xf]
        %v322 = vld [vmem:[#allocation6 + $0xc] sm:$0xf]
        %v323 = vld [vmem:[#allocation6 + $0x10] sm:$0xf]
        %v324 = vld [vmem:[#allocation6 + $0x14] sm:$0xf]
        %v325 = vld [vmem:[#allocation6 + $0x18] sm:$0xf]
        %v326 = vld [vmem:[#allocation6 + $0x1c] sm:$0xf]
        %v327 = vld [vmem:[#allocation6 + $0x20] sm:$0xf]
        %v328 = vld [vmem:[#allocation6 + $0x24] sm:$0xf]
        %v329 = vld [vmem:[#allocation6 + $0x28] sm:$0xf]
        %v330 = vld [vmem:[#allocation6 + $0x2c] sm:$0xf]
        %v331 = vld [vmem:[#allocation6 + $0x30] sm:$0xf]
        %v332 = vld [vmem:[#allocation6 + $0x34] sm:$0xf]
        %v333 = vld [vmem:[#allocation6 + $0x38] sm:$0xf]
        %v334 = vld [vmem:[#allocation6 + $0x3c] sm:$0xf]
        %v335 = vld [vmem:[#allocation2 + $0x8] sm:$0x1]
        %s336 = scalar_lea.vmem [#allocation6], 64
        %v337 = vld [vmem:[%s336] sm:$0xf]
        %v338 = vld [vmem:[%s336 + $0x4] sm:$0xf]
        %v339 = vld [vmem:[%s336 + $0x8] sm:$0xf]
        %v340 = vld [vmem:[%s336 + $0xc] sm:$0xf]
        %v341 = vld [vmem:[%s336 + $0x10] sm:$0xf]
        %v342 = vld [vmem:[%s336 + $0x14] sm:$0xf]
        %v343 = vld [vmem:[%s336 + $0x18] sm:$0xf]
        %v344 = vld [vmem:[%s336 + $0x1c] sm:$0xf]
        %v345 = vld [vmem:[%s336 + $0x20] sm:$0xf]
        %v346 = vld [vmem:[%s336 + $0x24] sm:$0xf]
        %v347 = vld [vmem:[%s336 + $0x28] sm:$0xf]
        %v348 = vld [vmem:[%s336 + $0x2c] sm:$0xf]
        %v349 = vld [vmem:[%s336 + $0x30] sm:$0xf]
        %v350 = vld [vmem:[%s336 + $0x34] sm:$0xf]
        %v351 = vld [vmem:[%s336 + $0x38] sm:$0xf]
        %v352 = vld [vmem:[%s336 + $0x3c] sm:$0xf]
        %v356 = vunpack.c.l.b16 %v317
        %v357 = vunpack.c.l.b16 %v318
        %v358 = vunpack.c.l.b16 %v335
        %v359 = vpack.c.b16 %v357, %v356
        %v360 = vpack.c.b16 %v358, %v358
        %vm361 = vsmask.f32 7424
        %v363 = vshrl.u32 %v359, 16
        %v365 = vshll.u32 %v359, 16
        %v367 = vrot.slane %v365, 1
        %v368 = vor.u32 %v363, %v367
        %v370 = vshll.u32 %v360, 16
        %v372 = vrot.slane %v370, 1
        %v373 = vsel %vm361, %v368, %v372
        %v391 = vunpack.c.l.b16 %v337
        %v392 = vunpack.c.l.b16 %v338
        %v393 = vunpack.c.l.b16 %v339
        %v394 = vunpack.c.l.b16 %v340
        %v395 = vunpack.c.l.b16 %v341
        %v396 = vunpack.c.l.b16 %v342
        %v397 = vunpack.c.l.b16 %v343
        %v398 = vunpack.c.l.b16 %v344
        %v399 = vunpack.c.l.b16 %v345
        %v400 = vunpack.c.l.b16 %v346
        %v401 = vunpack.c.l.b16 %v347
        %v402 = vunpack.c.l.b16 %v348
        %v403 = vunpack.c.l.b16 %v349
        %v404 = vunpack.c.l.b16 %v350
        %v405 = vunpack.c.l.b16 %v351
        %v406 = vunpack.c.l.b16 %v352
        %v407 = vpack.c.b16 %v392, %v391
        %v408 = vpack.c.b16 %v394, %v393
        %v409 = vpack.c.b16 %v396, %v395
        %v410 = vpack.c.b16 %v398, %v397
        %v411 = vpack.c.b16 %v400, %v399
        %v412 = vpack.c.b16 %v402, %v401
        %v413 = vpack.c.b16 %v404, %v403
        %v414 = vpack.c.b16 %v406, %v405
        %423 = vmatprep.subr.bf16.mxu0 0
        %424 = vmatpush1.bf16.msra.mxu0 %v414
        %425 = vmatprep.subr.bf16.mxu0 0
        %426 = vmatpush1.bf16.msra.mxu0 %v413
        %427 = vmatprep.subr.bf16.mxu0 0
        %428 = vmatpush1.bf16.msra.mxu0 %v412
        %429 = vmatprep.subr.bf16.mxu0 0
        %430 = vmatpush1.bf16.msra.mxu0 %v411
        %431 = vmatprep.subr.bf16.mxu0 0
        %432 = vmatpush1.bf16.msra.mxu0 %v410
        %433 = vmatprep.subr.bf16.mxu0 0
        %434 = vmatpush1.bf16.msra.mxu0 %v409
        %435 = vmatprep.subr.bf16.mxu0 0
        %436 = vmatpush1.bf16.msra.mxu0 %v408
        %437 = vmatprep.subr.bf16.mxu0 0
        %438 = vmatpush1.bf16.msra.mxu0 %v407
        %439 = vmatprep.subr.bf16.mxu0 0
        %440 = vmatpush2.bf16.msra.mxu0 0
        %441 = vmatprep.subr.bf16.mxu0 0
        %442 = vmatpush2.bf16.msra.mxu0 0
        %443 = vmatprep.subr.bf16.mxu0 0
        %444 = vmatpush2.bf16.msra.mxu0 0
        %445 = vmatprep.subr.bf16.mxu0 0
        %446 = vmatpush2.bf16.msra.mxu0 0
        %447 = vmatprep.subr.bf16.mxu0 0
        %448 = vmatpush2.bf16.msra.mxu0 0
        %449 = vmatprep.subr.bf16.mxu0 0
        %450 = vmatpush2.bf16.msra.mxu0 0
        %451 = vmatprep.subr.bf16.mxu0 0
        %452 = vmatpush2.bf16.msra.mxu0 0
        %453 = vmatprep.subr.bf16.mxu0 0
        %454 = vmatpush2.bf16.msra.mxu0 0
        %455 = vmatprep.mubr.bf16.mxu0 0
        %456 = vmatmul.mubr.bf16.gmra.mxu0 %v373
        %v457 = vpop.f32.mrf.mxu0
        %v458 = vadd.f32 0.0, %v457
        %v459 = vpop.f32.mrf.mxu0
        %v460 = vpop.f32.mrf.mxu0
        %v461 = vadd.f32 0.0, %v460
        %v462 = vpop.f32.mrf.mxu0
        %463 = vdwg.mxu0
        %v481 = vunpack.c.l.b16 %v319
        %v482 = vunpack.c.l.b16 %v320
        %v483 = vunpack.c.l.b16 %v321
        %v484 = vunpack.c.l.b16 %v322
        %v485 = vunpack.c.l.b16 %v323
        %v486 = vunpack.c.l.b16 %v324
        %v487 = vunpack.c.l.b16 %v325
        %v488 = vunpack.c.l.b16 %v326
        %v489 = vunpack.c.l.b16 %v327
        %v490 = vunpack.c.l.b16 %v328
        %v491 = vunpack.c.l.b16 %v329
        %v492 = vunpack.c.l.b16 %v330
        %v493 = vunpack.c.l.b16 %v331
        %v494 = vunpack.c.l.b16 %v332
        %v495 = vunpack.c.l.b16 %v333
        %v496 = vunpack.c.l.b16 %v334
        %v497 = vpack.c.b16 %v482, %v481
        %v498 = vpack.c.b16 %v484, %v483
        %v499 = vpack.c.b16 %v486, %v485
        %v500 = vpack.c.b16 %v488, %v487
        %v501 = vpack.c.b16 %v490, %v489
        %v502 = vpack.c.b16 %v492, %v491
        %v503 = vpack.c.b16 %v494, %v493
        %v504 = vpack.c.b16 %v496, %v495
        %513 = vmatprep.subr.bf16.mxu0 0
        %514 = vmatpush1.bf16.msra.mxu0 %v504
        %515 = vmatprep.subr.bf16.mxu0 0
        %516 = vmatpush1.bf16.msra.mxu0 %v503
        %517 = vmatprep.subr.bf16.mxu0 0
        %518 = vmatpush1.bf16.msra.mxu0 %v502
        %519 = vmatprep.subr.bf16.mxu0 0
        %520 = vmatpush1.bf16.msra.mxu0 %v501
        %521 = vmatprep.subr.bf16.mxu0 0
        %522 = vmatpush1.bf16.msra.mxu0 %v500
        %523 = vmatprep.subr.bf16.mxu0 0
        %524 = vmatpush1.bf16.msra.mxu0 %v499
        %525 = vmatprep.subr.bf16.mxu0 0
        %526 = vmatpush1.bf16.msra.mxu0 %v498
        %527 = vmatprep.subr.bf16.mxu0 0
        %528 = vmatpush1.bf16.msra.mxu0 %v497
        %529 = vmatprep.subr.bf16.mxu0 0
        %530 = vmatpush2.bf16.msra.mxu0 0
        %531 = vmatprep.subr.bf16.mxu0 0
        %532 = vmatpush2.bf16.msra.mxu0 0
        %533 = vmatprep.subr.bf16.mxu0 0
        %534 = vmatpush2.bf16.msra.mxu0 0
        %535 = vmatprep.subr.bf16.mxu0 0
        %536 = vmatpush2.bf16.msra.mxu0 0
        %537 = vmatprep.subr.bf16.mxu0 0
        %538 = vmatpush2.bf16.msra.mxu0 0
        %539 = vmatprep.subr.bf16.mxu0 0
        %540 = vmatpush2.bf16.msra.mxu0 0
        %541 = vmatprep.subr.bf16.mxu0 0
        %542 = vmatpush2.bf16.msra.mxu0 0
        %543 = vmatprep.subr.bf16.mxu0 0
        %544 = vmatpush2.bf16.msra.mxu0 0
        %545 = vmatprep.mubr.bf16.mxu0 0
        %546 = vmatmul.mubr.bf16.gmra.mxu0 %v359
        %v547 = vpop.f32.mrf.mxu0
        %v548 = vadd.f32 %v458, %v547
        %v549 = vpop.f32.mrf.mxu0
        %v550 = vpop.f32.mrf.mxu0
        %v551 = vadd.f32 %v461, %v550
        %v552 = vpop.f32.mrf.mxu0
        %553 = vdwg.mxu0
        %v554 = vld [vmem:[#allocation2] sm:$0xe]
        %s555 = scalar_lea.vmem [#allocation6], 128
        %v556 = vld [vmem:[%s555] sm:$0xf]
        %v557 = vld [vmem:[%s555 + $0x4] sm:$0xf]
        %v558 = vld [vmem:[%s555 + $0x8] sm:$0xf]
        %v559 = vld [vmem:[%s555 + $0xc] sm:$0xf]
        %v560 = vld [vmem:[%s555 + $0x10] sm:$0xf]
        %v561 = vld [vmem:[%s555 + $0x14] sm:$0xf]
        %v562 = vld [vmem:[%s555 + $0x18] sm:$0xf]
        %v563 = vld [vmem:[%s555 + $0x1c] sm:$0xf]
        %v564 = vld [vmem:[%s555 + $0x20] sm:$0xf]
        %v565 = vld [vmem:[%s555 + $0x24] sm:$0xf]
        %v566 = vld [vmem:[%s555 + $0x28] sm:$0xf]
        %v567 = vld [vmem:[%s555 + $0x2c] sm:$0xf]
        %v568 = vld [vmem:[%s555 + $0x30] sm:$0xf]
        %v569 = vld [vmem:[%s555 + $0x34] sm:$0xf]
        %v570 = vld [vmem:[%s555 + $0x38] sm:$0xf]
        %v571 = vld [vmem:[%s555 + $0x3c] sm:$0xf]
        %v573 = vunpack.c.l.b16 %v554
        %v574 = vpack.c.b16 %v357, %v573
        %vm575 = vcmask 1046528
        %v576 = vrot.slane %v574, 1
        %v577 = vrot.slane %v360, 1
        %v578 = vsel %vm575, %v576, %v577
        %v596 = vunpack.c.l.b16 %v556
        %v597 = vunpack.c.l.b16 %v557
        %v598 = vunpack.c.l.b16 %v558
        %v599 = vunpack.c.l.b16 %v559
        %v600 = vunpack.c.l.b16 %v560
        %v601 = vunpack.c.l.b16 %v561
        %v602 = vunpack.c.l.b16 %v562
        %v603 = vunpack.c.l.b16 %v563
        %v604 = vunpack.c.l.b16 %v564
        %v605 = vunpack.c.l.b16 %v565
        %v606 = vunpack.c.l.b16 %v566
        %v607 = vunpack.c.l.b16 %v567
        %v608 = vunpack.c.l.b16 %v568
        %v609 = vunpack.c.l.b16 %v569
        %v610 = vunpack.c.l.b16 %v570
        %v611 = vunpack.c.l.b16 %v571
        %v612 = vpack.c.b16 %v597, %v596
        %v613 = vpack.c.b16 %v599, %v598
        %v614 = vpack.c.b16 %v601, %v600
        %v615 = vpack.c.b16 %v603, %v602
        %v616 = vpack.c.b16 %v605, %v604
        %v617 = vpack.c.b16 %v607, %v606
        %v618 = vpack.c.b16 %v609, %v608
        %v619 = vpack.c.b16 %v611, %v610
        %628 = vmatprep.subr.bf16.mxu0 0
        %629 = vmatpush1.bf16.msra.mxu0 %v619
        %630 = vmatprep.subr.bf16.mxu0 0
        %631 = vmatpush1.bf16.msra.mxu0 %v618
        %632 = vmatprep.subr.bf16.mxu0 0
        %633 = vmatpush1.bf16.msra.mxu0 %v617
        %634 = vmatprep.subr.bf16.mxu0 0
        %635 = vmatpush1.bf16.msra.mxu0 %v616
        %636 = vmatprep.subr.bf16.mxu0 0
        %637 = vmatpush1.bf16.msra.mxu0 %v615
        %638 = vmatprep.subr.bf16.mxu0 0
        %639 = vmatpush1.bf16.msra.mxu0 %v614
        %640 = vmatprep.subr.bf16.mxu0 0
        %641 = vmatpush1.bf16.msra.mxu0 %v613
        %642 = vmatprep.subr.bf16.mxu0 0
        %643 = vmatpush1.bf16.msra.mxu0 %v612
        %644 = vmatprep.subr.bf16.mxu0 0
        %645 = vmatpush2.bf16.msra.mxu0 0
        %646 = vmatprep.subr.bf16.mxu0 0
        %647 = vmatpush2.bf16.msra.mxu0 0
        %648 = vmatprep.subr.bf16.mxu0 0
        %649 = vmatpush2.bf16.msra.mxu0 0
        %650 = vmatprep.subr.bf16.mxu0 0
        %651 = vmatpush2.bf16.msra.mxu0 0
        %652 = vmatprep.subr.bf16.mxu0 0
        %653 = vmatpush2.bf16.msra.mxu0 0
        %654 = vmatprep.subr.bf16.mxu0 0
        %655 = vmatpush2.bf16.msra.mxu0 0
        %656 = vmatprep.subr.bf16.mxu0 0
        %657 = vmatpush2.bf16.msra.mxu0 0
        %658 = vmatprep.subr.bf16.mxu0 0
        %659 = vmatpush2.bf16.msra.mxu0 0
        %660 = vmatprep.mubr.bf16.mxu0 0
        %661 = vmatmul.mubr.bf16.gmra.mxu0 %v578
        %v662 = vpop.f32.mrf.mxu0
        %v663 = vadd.f32 0.0, %v662
        %v664 = vpop.f32.mrf.mxu0
        %v665 = vpop.f32.mrf.mxu0
        %v666 = vadd.f32 0.0, %v665
        %v667 = vpop.f32.mrf.mxu0
        %668 = vdwg.mxu0
        %v669 = vadd.f32 %v548, %v663
        %v670 = vadd.f32 %v551, %v666
        %v671 = vld [vmem:[%s2] sm:$0x1]
        %v673 = vlaneseq
        %v674 = vshrl.u32 %v673, 7
        %v675 = vsub.s32 0, %v674
        %v676 = vrot.slane %v671, %v675
        %v678 = vadd.f32 %v669, %v676
        %v679 = vadd.f32 %v670, %v676
        %v680 = vmax.f32 %v678, 0.0
        %v681 = vmax.f32 %v679, 0.0
        %v682 = vpack.c.bf16 %v681, %v680
        %v684 = vunpack.c.l.b16 %v682
        %v685 = vunpack.c.h.b16 %v682
        %v686 = vpack.c.b16 %v684, %v684
        %v687 = vpack.c.b16 %v685, %v685
        %v689 = vshrl.u32 %v686, 16
        %v691 = vrot.slane %v689, 7
        %v692 = vshll.u32 %v686, 16
        %v694 = vor.u32 %v691, %v692
        %v695 = vrot.slane %v691, 4
        %v697 = vshrl.u32 %v687, 16
        %v699 = vrot.slane %v697, 7
        %v700 = vshll.u32 %v687, 16
        %v702 = vor.u32 %v699, %v700
        %v703 = vsel %vm287, %v695, %v702
        %v704 = vrot.slane %v699, 4
        %v708 = vsel %vm309, %v694, %v317
        %709 = vst [vmem:[#allocation2] sm:$0xf] %v708
        %710 = vst [vmem:[#allocation2 + $0x4] sm:$0xf] %v703
        %v711 = vld [vmem:[#allocation2 + $0x8] sm:$0x1]
        %v712 = vsel %vm275, %v704, %v711
        %713 = vst [vmem:[#allocation2 + $0x8] sm:$0x1] %v712
        %v714 = vld [vmem:[#allocation2] sm:$0xf]
        %v715 = vld [vmem:[#allocation2 + $0x4] sm:$0xf]
        %v716 = vld [vmem:[#allocation8] sm:$0xf]
        %v717 = vld [vmem:[#allocation8 + $0x4] sm:$0xf]
        %v718 = vld [vmem:[#allocation8 + $0x8] sm:$0xf]
        %v719 = vld [vmem:[#allocation8 + $0xc] sm:$0xf]
        %v720 = vld [vmem:[#allocation8 + $0x10] sm:$0xf]
        %v721 = vld [vmem:[#allocation8 + $0x14] sm:$0xf]
        %v722 = vld [vmem:[#allocation8 + $0x18] sm:$0xf]
        %v723 = vld [vmem:[#allocation8 + $0x1c] sm:$0xf]
        %v724 = vld [vmem:[#allocation8 + $0x20] sm:$0xf]
        %v725 = vld [vmem:[#allocation8 + $0x24] sm:$0xf]
        %v726 = vld [vmem:[#allocation8 + $0x28] sm:$0xf]
        %v727 = vld [vmem:[#allocation8 + $0x2c] sm:$0xf]
        %v728 = vld [vmem:[#allocation8 + $0x30] sm:$0xf]
        %v729 = vld [vmem:[#allocation8 + $0x34] sm:$0xf]
        %v730 = vld [vmem:[#allocation8 + $0x38] sm:$0xf]
        %v731 = vld [vmem:[#allocation8 + $0x3c] sm:$0xf]
        %v732 = vld [vmem:[#allocation2 + $0x8] sm:$0x1]
        %s733 = scalar_lea.vmem [#allocation8], 64
        %v734 = vld [vmem:[%s733] sm:$0xf]
        %v735 = vld [vmem:[%s733 + $0x4] sm:$0xf]
        %v736 = vld [vmem:[%s733 + $0x8] sm:$0xf]
        %v737 = vld [vmem:[%s733 + $0xc] sm:$0xf]
        %v738 = vld [vmem:[%s733 + $0x10] sm:$0xf]
        %v739 = vld [vmem:[%s733 + $0x14] sm:$0xf]
        %v740 = vld [vmem:[%s733 + $0x18] sm:$0xf]
        %v741 = vld [vmem:[%s733 + $0x1c] sm:$0xf]
        %v742 = vld [vmem:[%s733 + $0x20] sm:$0xf]
        %v743 = vld [vmem:[%s733 + $0x24] sm:$0xf]
        %v744 = vld [vmem:[%s733 + $0x28] sm:$0xf]
        %v745 = vld [vmem:[%s733 + $0x2c] sm:$0xf]
        %v746 = vld [vmem:[%s733 + $0x30] sm:$0xf]
        %v747 = vld [vmem:[%s733 + $0x34] sm:$0xf]
        %v748 = vld [vmem:[%s733 + $0x38] sm:$0xf]
        %v749 = vld [vmem:[%s733 + $0x3c] sm:$0xf]
        %v753 = vunpack.c.l.b16 %v714
        %v754 = vunpack.c.l.b16 %v715
        %v755 = vunpack.c.l.b16 %v732
        %v756 = vpack.c.b16 %v754, %v753
        %v757 = vpack.c.b16 %v755, %v755
        %v759 = vshrl.u32 %v756, 16
        %v761 = vshll.u32 %v756, 16
        %v763 = vrot.slane %v761, 1
        %v764 = vor.u32 %v759, %v763
        %v766 = vshll.u32 %v757, 16
        %v768 = vrot.slane %v766, 1
        %v769 = vsel %vm361, %v764, %v768
        %v787 = vunpack.c.l.b16 %v734
        %v788 = vunpack.c.l.b16 %v735
        %v789 = vunpack.c.l.b16 %v736
        %v790 = vunpack.c.l.b16 %v737
        %v791 = vunpack.c.l.b16 %v738
        %v792 = vunpack.c.l.b16 %v739
        %v793 = vunpack.c.l.b16 %v740
        %v794 = vunpack.c.l.b16 %v741
        %v795 = vunpack.c.l.b16 %v742
        %v796 = vunpack.c.l.b16 %v743
        %v797 = vunpack.c.l.b16 %v744
        %v798 = vunpack.c.l.b16 %v745
        %v799 = vunpack.c.l.b16 %v746
        %v800 = vunpack.c.l.b16 %v747
        %v801 = vunpack.c.l.b16 %v748
        %v802 = vunpack.c.l.b16 %v749
        %v803 = vpack.c.b16 %v788, %v787
        %v804 = vpack.c.b16 %v790, %v789
        %v805 = vpack.c.b16 %v792, %v791
        %v806 = vpack.c.b16 %v794, %v793
        %v807 = vpack.c.b16 %v796, %v795
        %v808 = vpack.c.b16 %v798, %v797
        %v809 = vpack.c.b16 %v800, %v799
        %v810 = vpack.c.b16 %v802, %v801
        %819 = vmatprep.subr.bf16.mxu0 0
        %820 = vmatpush1.bf16.msra.mxu0 %v810
        %821 = vmatprep.subr.bf16.mxu0 0
        %822 = vmatpush1.bf16.msra.mxu0 %v809
        %823 = vmatprep.subr.bf16.mxu0 0
        %824 = vmatpush1.bf16.msra.mxu0 %v808
        %825 = vmatprep.subr.bf16.mxu0 0
        %826 = vmatpush1.bf16.msra.mxu0 %v807
        %827 = vmatprep.subr.bf16.mxu0 0
        %828 = vmatpush1.bf16.msra.mxu0 %v806
        %829 = vmatprep.subr.bf16.mxu0 0
        %830 = vmatpush1.bf16.msra.mxu0 %v805
        %831 = vmatprep.subr.bf16.mxu0 0
        %832 = vmatpush1.bf16.msra.mxu0 %v804
        %833 = vmatprep.subr.bf16.mxu0 0
        %834 = vmatpush1.bf16.msra.mxu0 %v803
        %835 = vmatprep.subr.bf16.mxu0 0
        %836 = vmatpush2.bf16.msra.mxu0 0
        %837 = vmatprep.subr.bf16.mxu0 0
        %838 = vmatpush2.bf16.msra.mxu0 0
        %839 = vmatprep.subr.bf16.mxu0 0
        %840 = vmatpush2.bf16.msra.mxu0 0
        %841 = vmatprep.subr.bf16.mxu0 0
        %842 = vmatpush2.bf16.msra.mxu0 0
        %843 = vmatprep.subr.bf16.mxu0 0
        %844 = vmatpush2.bf16.msra.mxu0 0
        %845 = vmatprep.subr.bf16.mxu0 0
        %846 = vmatpush2.bf16.msra.mxu0 0
        %847 = vmatprep.subr.bf16.mxu0 0
        %848 = vmatpush2.bf16.msra.mxu0 0
        %849 = vmatprep.subr.bf16.mxu0 0
        %850 = vmatpush2.bf16.msra.mxu0 0
        %851 = vmatprep.mubr.bf16.mxu0 0
        %852 = vmatmul.mubr.bf16.gmra.mxu0 %v769
        %v853 = vpop.f32.mrf.mxu0
        %v854 = vadd.f32 0.0, %v853
        %v855 = vpop.f32.mrf.mxu0
        %v856 = vpop.f32.mrf.mxu0
        %v857 = vadd.f32 0.0, %v856
        %v858 = vpop.f32.mrf.mxu0
        %859 = vdwg.mxu0
        %v877 = vunpack.c.l.b16 %v716
        %v878 = vunpack.c.l.b16 %v717
        %v879 = vunpack.c.l.b16 %v718
        %v880 = vunpack.c.l.b16 %v719
        %v881 = vunpack.c.l.b16 %v720
        %v882 = vunpack.c.l.b16 %v721
        %v883 = vunpack.c.l.b16 %v722
        %v884 = vunpack.c.l.b16 %v723
        %v885 = vunpack.c.l.b16 %v724
        %v886 = vunpack.c.l.b16 %v725
        %v887 = vunpack.c.l.b16 %v726
        %v888 = vunpack.c.l.b16 %v727
        %v889 = vunpack.c.l.b16 %v728
        %v890 = vunpack.c.l.b16 %v729
        %v891 = vunpack.c.l.b16 %v730
        %v892 = vunpack.c.l.b16 %v731
        %v893 = vpack.c.b16 %v878, %v877
        %v894 = vpack.c.b16 %v880, %v879
        %v895 = vpack.c.b16 %v882, %v881
        %v896 = vpack.c.b16 %v884, %v883
        %v897 = vpack.c.b16 %v886, %v885
        %v898 = vpack.c.b16 %v888, %v887
        %v899 = vpack.c.b16 %v890, %v889
        %v900 = vpack.c.b16 %v892, %v891
        %909 = vmatprep.subr.bf16.mxu0 0
        %910 = vmatpush1.bf16.msra.mxu0 %v900
        %911 = vmatprep.subr.bf16.mxu0 0
        %912 = vmatpush1.bf16.msra.mxu0 %v899
        %913 = vmatprep.subr.bf16.mxu0 0
        %914 = vmatpush1.bf16.msra.mxu0 %v898
        %915 = vmatprep.subr.bf16.mxu0 0
        %916 = vmatpush1.bf16.msra.mxu0 %v897
        %917 = vmatprep.subr.bf16.mxu0 0
        %918 = vmatpush1.bf16.msra.mxu0 %v896
        %919 = vmatprep.subr.bf16.mxu0 0
        %920 = vmatpush1.bf16.msra.mxu0 %v895
        %921 = vmatprep.subr.bf16.mxu0 0
        %922 = vmatpush1.bf16.msra.mxu0 %v894
        %923 = vmatprep.subr.bf16.mxu0 0
        %924 = vmatpush1.bf16.msra.mxu0 %v893
        %925 = vmatprep.subr.bf16.mxu0 0
        %926 = vmatpush2.bf16.msra.mxu0 0
        %927 = vmatprep.subr.bf16.mxu0 0
        %928 = vmatpush2.bf16.msra.mxu0 0
        %929 = vmatprep.subr.bf16.mxu0 0
        %930 = vmatpush2.bf16.msra.mxu0 0
        %931 = vmatprep.subr.bf16.mxu0 0
        %932 = vmatpush2.bf16.msra.mxu0 0
        %933 = vmatprep.subr.bf16.mxu0 0
        %934 = vmatpush2.bf16.msra.mxu0 0
        %935 = vmatprep.subr.bf16.mxu0 0
        %936 = vmatpush2.bf16.msra.mxu0 0
        %937 = vmatprep.subr.bf16.mxu0 0
        %938 = vmatpush2.bf16.msra.mxu0 0
        %939 = vmatprep.subr.bf16.mxu0 0
        %940 = vmatpush2.bf16.msra.mxu0 0
        %941 = vmatprep.mubr.bf16.mxu0 0
        %942 = vmatmul.mubr.bf16.gmra.mxu0 %v756
        %v943 = vpop.f32.mrf.mxu0
        %v944 = vadd.f32 %v854, %v943
        %v945 = vpop.f32.mrf.mxu0
        %v946 = vpop.f32.mrf.mxu0
        %v947 = vadd.f32 %v857, %v946
        %v948 = vpop.f32.mrf.mxu0
        %949 = vdwg.mxu0
        %v950 = vld [vmem:[#allocation2] sm:$0xe]
        %s951 = scalar_lea.vmem [#allocation8], 128
        %v952 = vld [vmem:[%s951] sm:$0xf]
        %v953 = vld [vmem:[%s951 + $0x4] sm:$0xf]
        %v954 = vld [vmem:[%s951 + $0x8] sm:$0xf]
        %v955 = vld [vmem:[%s951 + $0xc] sm:$0xf]
        %v956 = vld [vmem:[%s951 + $0x10] sm:$0xf]
        %v957 = vld [vmem:[%s951 + $0x14] sm:$0xf]
        %v958 = vld [vmem:[%s951 + $0x18] sm:$0xf]
        %v959 = vld [vmem:[%s951 + $0x1c] sm:$0xf]
        %v960 = vld [vmem:[%s951 + $0x20] sm:$0xf]
        %v961 = vld [vmem:[%s951 + $0x24] sm:$0xf]
        %v962 = vld [vmem:[%s951 + $0x28] sm:$0xf]
        %v963 = vld [vmem:[%s951 + $0x2c] sm:$0xf]
        %v964 = vld [vmem:[%s951 + $0x30] sm:$0xf]
        %v965 = vld [vmem:[%s951 + $0x34] sm:$0xf]
        %v966 = vld [vmem:[%s951 + $0x38] sm:$0xf]
        %v967 = vld [vmem:[%s951 + $0x3c] sm:$0xf]
        %v969 = vunpack.c.l.b16 %v950
        %v970 = vpack.c.b16 %v754, %v969
        %v971 = vrot.slane %v970, 1
        %v972 = vrot.slane %v757, 1
        %v973 = vsel %vm575, %v971, %v972
        %v991 = vunpack.c.l.b16 %v952
        %v992 = vunpack.c.l.b16 %v953
        %v993 = vunpack.c.l.b16 %v954
        %v994 = vunpack.c.l.b16 %v955
        %v995 = vunpack.c.l.b16 %v956
        %v996 = vunpack.c.l.b16 %v957
        %v997 = vunpack.c.l.b16 %v958
        %v998 = vunpack.c.l.b16 %v959
        %v999 = vunpack.c.l.b16 %v960
        %v1000 = vunpack.c.l.b16 %v961
        %v1001 = vunpack.c.l.b16 %v962
        %v1002 = vunpack.c.l.b16 %v963
        %v1003 = vunpack.c.l.b16 %v964
        %v1004 = vunpack.c.l.b16 %v965
        %v1005 = vunpack.c.l.b16 %v966
        %v1006 = vunpack.c.l.b16 %v967
        %v1007 = vpack.c.b16 %v992, %v991
        %v1008 = vpack.c.b16 %v994, %v993
        %v1009 = vpack.c.b16 %v996, %v995
        %v1010 = vpack.c.b16 %v998, %v997
        %v1011 = vpack.c.b16 %v1000, %v999
        %v1012 = vpack.c.b16 %v1002, %v1001
        %v1013 = vpack.c.b16 %v1004, %v1003
        %v1014 = vpack.c.b16 %v1006, %v1005
        %1023 = vmatprep.subr.bf16.mxu0 0
        %1024 = vmatpush1.bf16.msra.mxu0 %v1014
        %1025 = vmatprep.subr.bf16.mxu0 0
        %1026 = vmatpush1.bf16.msra.mxu0 %v1013
        %1027 = vmatprep.subr.bf16.mxu0 0
        %1028 = vmatpush1.bf16.msra.mxu0 %v1012
        %1029 = vmatprep.subr.bf16.mxu0 0
        %1030 = vmatpush1.bf16.msra.mxu0 %v1011
        %1031 = vmatprep.subr.bf16.mxu0 0
        %1032 = vmatpush1.bf16.msra.mxu0 %v1010
        %1033 = vmatprep.subr.bf16.mxu0 0
        %1034 = vmatpush1.bf16.msra.mxu0 %v1009
        %1035 = vmatprep.subr.bf16.mxu0 0
        %1036 = vmatpush1.bf16.msra.mxu0 %v1008
        %1037 = vmatprep.subr.bf16.mxu0 0
        %1038 = vmatpush1.bf16.msra.mxu0 %v1007
        %1039 = vmatprep.subr.bf16.mxu0 0
        %1040 = vmatpush2.bf16.msra.mxu0 0
        %1041 = vmatprep.subr.bf16.mxu0 0
        %1042 = vmatpush2.bf16.msra.mxu0 0
        %1043 = vmatprep.subr.bf16.mxu0 0
        %1044 = vmatpush2.bf16.msra.mxu0 0
        %1045 = vmatprep.subr.bf16.mxu0 0
        %1046 = vmatpush2.bf16.msra.mxu0 0
        %1047 = vmatprep.subr.bf16.mxu0 0
        %1048 = vmatpush2.bf16.msra.mxu0 0
        %1049 = vmatprep.subr.bf16.mxu0 0
        %1050 = vmatpush2.bf16.msra.mxu0 0
        %1051 = vmatprep.subr.bf16.mxu0 0
        %1052 = vmatpush2.bf16.msra.mxu0 0
        %1053 = vmatprep.subr.bf16.mxu0 0
        %1054 = vmatpush2.bf16.msra.mxu0 0
        %1055 = vmatprep.mubr.bf16.mxu0 0
        %1056 = vmatmul.mubr.bf16.gmra.mxu0 %v973
        %v1057 = vpop.f32.mrf.mxu0
        %v1058 = vadd.f32 0.0, %v1057
        %v1059 = vpop.f32.mrf.mxu0
        %v1060 = vpop.f32.mrf.mxu0
        %v1061 = vadd.f32 0.0, %v1060
        %v1062 = vpop.f32.mrf.mxu0
        %1063 = vdwg.mxu0
        %v1064 = vadd.f32 %v944, %v1058
        %v1065 = vadd.f32 %v947, %v1061
        %v1066 = vld [vmem:[%s4] sm:$0x1]
        %v1068 = vlaneseq
        %v1069 = vshrl.u32 %v1068, 7
        %v1070 = vsub.s32 0, %v1069
        %v1071 = vrot.slane %v1066, %v1070
        %v1073 = vadd.f32 %v1064, %v1071
        %v1074 = vadd.f32 %v1065, %v1071
        %v1075 = vld [vmem:[%s237] sm:$0xf]
        %v1076 = vld [vmem:[%s237 + $0x4] sm:$0xf]
        %v1077 = vunpack.c.l.bf16 %v1075
        %v1078 = vunpack.c.l.bf16 %v1076
        %v1079 = vadd.f32 %v1073, %v1077
        %v1080 = vadd.f32 %v1074, %v1078
        %v1081 = vmax.f32 %v1079, 0.0
        %v1082 = vmax.f32 %v1080, 0.0
        %v1083 = vpack.c.bf16 %v1082, %v1081
        %v1085 = vunpack.c.l.b16 %v1083
        %v1086 = vunpack.c.h.b16 %v1083
        %v1087 = vpack.c.b16 %v1085, %v1085
        %v1088 = vpack.c.b16 %v1086, %v1086
        %1091 = vst [vmem:[%s271] sm:$0xf] %v1087
        %1092 = vst [vmem:[%s271 + $0x4] sm:$0xf] %v1088
        %s1093 = sand.u32 %s141, 1
        %s1094 = scalar_lea.sflag [#allocation5], %s1093
        %s1095 = sand.u32 %s141, 1
        %s1096 = smul.addr %s1095, 8
        %s1097 = scalar_lea.vmem [#allocation9], %s1096
        // Predicated region
        $region53: #{tpu_custom_call.1} parent=39 // pred_check
          %p1098 = pneg %p151
        $region54: #{tpu_custom_call.1} parent=39 // pred_check_branch
          %1100 = sbr.rel (%p1098) target = $region56
        $region55: #{tpu_custom_call.1} parent=39 // pred_region
          %s1102 = ssub.s32 128, 128
          %1103 = vsyncadd %s1094, %s1102
          %s1104 = smul.addr %s23, 2
          %s1105 = smul.addr %s1104, 64
          %s1106 = scalar_lea.hbm %s5, %s1105
          %s1107 = sshll.u32 %s1097, 4
          %s1108 = int_to_ptr.vmem [resolvable:$true] %s1107
          %1113 = dma.vmem_to_hbm [thread:$0]  %s1108, 128, %s1106, %s1094, 64, 64, 4
        $region56: #{tpu_custom_call.1} parent=39 // pred_fallthru
          _
      $region40: #{tpu_custom_call.1} parent=5 // pred_fallthru
        _
      %p1114 = scmp.le.s32.totalorder 2, %s18
      // Predicated region
      $region57: #{tpu_custom_call.1} parent=5 // pred_check
        %p1115 = pneg %p1114
      $region58: #{tpu_custom_call.1} parent=5 // pred_check_branch
        %1117 = sbr.rel (%p1115) target = $region60
      $region59: #{tpu_custom_call.1} parent=5 // pred_region
        %s1118 = ssub.s32 %s18, 2
        // Predicated region
        $region61: #{tpu_custom_call.1} parent=59 // pred_check
          %p1119 = pneg %p157
        $region62: #{tpu_custom_call.1} parent=59 // pred_check_branch
          %1121 = sbr.rel (%p1119) target = $region64
        $region63: #{tpu_custom_call.1} parent=59 // pred_region
          %s1122 = sand.u32 %s142, 1
          %s1123 = scalar_lea.sflag [#allocation5], %s1122
          %s1124 = sand.u32 %s142, 1
          %s1125 = smul.addr %s1124, 8
          %s1126 = scalar_lea.vmem [#allocation9], %s1125
          %1127 = dma.done %s1123, 128
        $region64: #{tpu_custom_call.1} parent=59 // pred_fallthru
          _
      $region60: #{tpu_custom_call.1} parent=5 // pred_fallthru
        _
    $region6: #{tpu_custom_call.1} parent=1 // loop_footer
      %s22 = sadd.s32 1, %s18
    $region7: #{tpu_custom_call.1} parent=1 // loop_footer_branch
      %17 = sbr.rel target = $region3
    $region8: #{tpu_custom_call.1} parent=1 // loop_exit
      _
    %1128 = vsyncpa [#allocation4], 1
    %s1129 = scalar_lea.sflag [#allocation4], 1
    %1130 = vsyncpa %s1129, 1
    %1131 = vsyncpa [#allocation7], 1
    %1132 = vsyncpa [#allocation5], 1
    %s1133 = scalar_lea.sflag [#allocation5], 1
    %1134 = vsyncpa %s1133, 1

</llo_original>
